<compile_context>
chip_gen: v7x
topology: tpu7x:2x2x1
jax: 0.10.0
libtpu: 0.0.40
codegen_flags: <defaults>
</compile_context>

<pallas_src>
import math

import jax
import jax.numpy as jnp
from jax import lax
from jax.experimental import pallas as pl
from jax.experimental.pallas import tpu as pltpu


# --------------------------------------------------------------------------- #
# Fused per-batch kernel
# --------------------------------------------------------------------------- #
def make_encoder_layer_kernel(d_model: int):
    H = d_model                    # attention d_model == num_heads, head_dim == 1
    head_dim = 1
    inv_sqrt_dk = 1.0 / math.sqrt(head_dim)
    # x @ W^T style contraction (torch (out, in) weights): contract last dims.
    nt_dims = (((1,), (1,)), ((), ()))

    def kernel(x_ref, wqkv_ref, bqkv_ref, wbig_ref, bbig_ref, o_ref):
        # x_ref:    (S, D)   one batch of tokens
        # wqkv_ref: (3D, D)  rows permuted in wrapper: [Q heads | K heads | V heads]
        # bqkv_ref: (3D, 1)  matching bias, as a column
        # wbig_ref: (S, S)   kron(I_{S/D}, W_out): output proj with "buggy" reshape folded in
        # bbig_ref: (1, S)   tiled output bias
        # o_ref:    (H, S)   same flat layout as this batch's (S, D) output rows
        x = x_ref[...]

        # ---- QKV projection, produced already transposed: (3D, S). One MXU pass.
        qkv_t = lax.dot_general(wqkv_ref[...], x, nt_dims,
                                preferred_element_type=jnp.float32) + bqkv_ref[...]
        q_t = qkv_t[0:H, :]            # (H, S)  row h == head h
        k_t = qkv_t[H:2 * H, :]        # (H, S)
        v_t = qkv_t[2 * H:3 * H, :]    # (H, S)

        # ---- head_dim == 1 attention, batched over the head axis (pure VPU) ----
        # scores[h, i, j] = q[h, i] * k[h, j] / sqrt(d_k)
        scores = q_t[:, :, None] * (k_t * inv_sqrt_dk)[:, None, :]   # (H, S, S)
        m = jnp.max(scores, axis=-1, keepdims=True)
        p = jnp.exp(scores - m)
        denom = jnp.sum(p, axis=-1, keepdims=True)
        attn = p * pl.reciprocal(denom, approx=False)                # softmax(dim=-1)
        vals = jnp.sum(attn * v_t[:, None, :], axis=-1)              # (H, S)

        # ---- output projection; W_big folds the "buggy" (B,H,S,1)->(B,S,H) reshape.
        # Result (H, S) has the identical flat layout as the (S, D) output rows of
        # this batch, so a single lane-dense store suffices (no scratch, no scatter).
        o_ref[...] = lax.dot_general(vals, wbig_ref[...], nt_dims,
                                     preferred_element_type=jnp.float32) + bbig_ref[...]

    return kernel


# --------------------------------------------------------------------------- #
# Wrapper (EncoderLayer.forward)
# --------------------------------------------------------------------------- #
def encoder_layer_forward(x, wqkv_t, bqkv, wout_t, bout, num_heads):
    """x: (B, S, D) with D == num_heads; weights in torch (out, in) layout."""
    B, S, D = x.shape
    assert D == num_heads, "EncoderLayer builds MultiHeadAttention(d_model=num_heads)"
    # TODO(synk): S % D != 0 makes the "buggy" reshape straddle head rows; not
    # needed for this module's valid test shapes.
    assert S % D == 0
    rpb = S // D
    f32 = jnp.float32

    # ---- trace-time weight re-layouts (wrapper-side, effectively free) ----------
    # 1) Permute qkv out-features so Q/K/V of all heads are contiguous row blocks
    #    (head h originally lives at interleaved rows 3h, 3h+1, 3h+2).
    wqkv_perm = wqkv_t.reshape(D, 3, D).transpose(1, 0, 2).reshape(3 * D, D).astype(f32)
    bqkv_col = bqkv.reshape(D, 3).T.reshape(3 * D, 1).astype(f32)
    # 2) Fold the "buggy" (B, H, S, 1) -> (B, S, H) reshape into the output
    #    projection: block-diagonal kron(I_rpb, W_out) applied to per-head rows.
    w_big = jnp.kron(jnp.eye(rpb, dtype=f32), wout_t.astype(f32))    # (S, S)
    b_big = jnp.tile(bout.astype(f32), rpb).reshape(1, S)            # (1, S)

    out = pl.pallas_call(
        make_encoder_layer_kernel(D),
        grid=(B,),
        in_specs=[
            pl.BlockSpec((None, S, D), lambda b: (b, 0, 0)),   # x: one batch per step
            pl.BlockSpec((3 * D, D), lambda b: (0, 0)),        # resident weights
            pl.BlockSpec((3 * D, 1), lambda b: (0, 0)),
            pl.BlockSpec((S, S), lambda b: (0, 0)),
            pl.BlockSpec((1, S), lambda b: (0, 0)),
        ],
        out_specs=pl.BlockSpec((None, D, S), lambda b: (b, 0, 0)),
        out_shape=jax.ShapeDtypeStruct((B, D, S), f32),
        compiler_params=pltpu.CompilerParams(
            dimension_semantics=("parallel",)),    # batch grid -> both TCs on v7x
    )(x.astype(f32), wqkv_perm, bqkv_col, w_big, b_big)

    # (B, H, rpb*D) and (B, S, D) share the same flat layout: metadata-only reshape.
    return out.reshape(B, S, D)


# --------------------------------------------------------------------------- #
# Pure-JAX reference (mirrors the PyTorch module line-by-line)
# --------------------------------------------------------------------------- #
def reference_forward(x, wqkv_t, bqkv, wout_t, bout, num_heads):
    B, S, D = x.shape
    hd = D // num_heads
    qkv = jnp.einsum("bsd,ed->bse", x, wqkv_t) + bqkv           # (B, S, 3D)
    qkv = qkv.reshape(B, S, num_heads, 3 * hd)
    qkv = jnp.transpose(qkv, (0, 2, 1, 3))                      # (B, H, S, 3hd)
    q, k, v = jnp.split(qkv, 3, axis=-1)
    scaled = jnp.einsum("bhqd,bhkd->bhqk", q, k) / math.sqrt(hd)
    attn = jax.nn.softmax(scaled, axis=-1)
    vals = jnp.einsum("bhqk,bhkd->bhqd", attn, v)               # (B, H, S, hd)
    vals = vals.reshape(B, S, num_heads * hd)                   # same "buggy" reshape
    return jnp.einsum("bsd,ed->bse", vals, wout_t) + bout


# --------------------------------------------------------------------------- #
if __name__ == "__main__":
    # EncoderLayer(d_model, ffn_hidden, num_heads, drop_prob): only num_heads
    # matters for the forward pass (attention d_model == num_heads, head_dim == 1).
    num_heads = 4
    D = num_heads          # attention d_model
    B, S = 2, 8            # batch, sequence length

    key = jax.random.PRNGKey(0)
    kx, kw1, kb1, kw2, kb2 = jax.random.split(key, 5)

    x = jax.random.normal(kx, (B, S, D), dtype=jnp.float32)

    # torch Linear convention: weight is (out_features, in_features)
    bound = 1.0 / math.sqrt(D)
    wqkv_t = jax.random.uniform(kw1, (3 * D, D), jnp.float32, -bound, bound)
    bqkv = jax.random.uniform(kb1, (3 * D,), jnp.float32, -bound, bound)
    wout_t = jax.random.uniform(kw2, (D, D), jnp.float32, -bound, bound)
    bout = jax.random.uniform(kb2, (D,), jnp.float32, -bound, bound)

    fwd = jax.jit(encoder_layer_forward, static_argnums=(5,))
    out = jax.block_until_ready(fwd(x, wqkv_t, bqkv, wout_t, bout, num_heads))

    ref = reference_forward(x, wqkv_t, bqkv, wout_t, bout, num_heads)
    assert out.shape == (B, S, D)
    assert jnp.allclose(out, ref, atol=1e-5, rtol=1e-5), "Pallas output mismatch vs reference"

    print("KERNEL_OK")
</pallas_src>

<mosaic_0001>
module attributes {stable_mosaic.version = 11 : i64} {
  func.func @kernel(%arg0: i32, %arg1: memref<1x8x4xf32, #tpu.memory_space<vmem>>, %arg2: memref<12x4xf32, #tpu.memory_space<vmem>>, %arg3: memref<12x1xf32, #tpu.memory_space<vmem>>, %arg4: memref<8x8xf32, #tpu.memory_space<vmem>>, %arg5: memref<1x8xf32, #tpu.memory_space<vmem>>, %arg6: memref<1x4x8xf32, #tpu.memory_space<vmem>>) attributes {dimension_semantics = [#tpu.dimension_semantics<parallel>], iteration_bounds = array<i64: 2>, scalar_prefetch = 0 : i64, scratch_operands = 0 : i64, tpu.core_type = #tpu.core_type<tc>, window_params = [{transform_indices = @transform_0, window_bounds = array<i64: 1, 8, 4>}, {pipeline_mode = #tpu.pipeline_mode<synchronous>, transform_indices = @transform_1, window_bounds = array<i64: 12, 4>}, {pipeline_mode = #tpu.pipeline_mode<synchronous>, transform_indices = @transform_2, window_bounds = array<i64: 12, 1>}, {pipeline_mode = #tpu.pipeline_mode<synchronous>, transform_indices = @transform_3, window_bounds = array<i64: 8, 8>}, {pipeline_mode = #tpu.pipeline_mode<synchronous>, transform_indices = @transform_4, window_bounds = array<i64: 1, 8>}, {transform_indices = @transform_5, window_bounds = array<i64: 1, 4, 8>}]} {
    %c0 = arith.constant 0 : index
    %c0_0 = arith.constant 0 : index
    %c0_1 = arith.constant 0 : index
    %0 = vector.load %arg1[%c0, %c0_0, %c0_1] : memref<1x8x4xf32, #tpu.memory_space<vmem>>, vector<1x8x4xf32>
    %1 = vector.shape_cast %0 : vector<1x8x4xf32> to vector<8x4xf32>
    %c0_2 = arith.constant 0 : index
    %c0_3 = arith.constant 0 : index
    %2 = vector.load %arg2[%c0_2, %c0_3] : memref<12x4xf32, #tpu.memory_space<vmem>>, vector<12x4xf32>
    %cst = arith.constant dense<0.000000e+00> : vector<12x8xf32>
    %3 = tpu.matmul %2, %1, %cst {dimension_numbers = #tpu.dot_dimension_numbers<[1], [1], [0], [0], [0, 0, 1, 0], [], []>} : vector<12x4xf32>, vector<8x4xf32>, vector<12x8xf32> -> vector<12x8xf32>
    %c0_4 = arith.constant 0 : index
    %c0_5 = arith.constant 0 : index
    %4 = vector.load %arg3[%c0_4, %c0_5] : memref<12x1xf32, #tpu.memory_space<vmem>>, vector<12x1xf32>
    %5 = vector.broadcast %4 : vector<12x1xf32> to vector<12x8xf32>
    %6 = arith.addf %3, %5 : vector<12x8xf32>
    %7 = vector.extract_strided_slice %6 {offsets = [0, 0], sizes = [4, 8], strides = [1, 1]} : vector<12x8xf32> to vector<4x8xf32>
    %8 = vector.extract_strided_slice %6 {offsets = [4, 0], sizes = [4, 8], strides = [1, 1]} : vector<12x8xf32> to vector<4x8xf32>
    %9 = vector.extract_strided_slice %6 {offsets = [8, 0], sizes = [4, 8], strides = [1, 1]} : vector<12x8xf32> to vector<4x8xf32>
    %10 = vector.shape_cast %7 : vector<4x8xf32> to vector<4x8x1xf32>
    %cst_6 = arith.constant 1.000000e+00 : f32
    %11 = vector.broadcast %cst_6 : f32 to vector<4x8xf32>
    %12 = arith.mulf %8, %11 : vector<4x8xf32>
    %13 = vector.shape_cast %12 : vector<4x8xf32> to vector<4x1x8xf32>
    %14 = vector.broadcast %10 : vector<4x8x1xf32> to vector<4x8x8xf32>
    %15 = vector.broadcast %13 : vector<4x1x8xf32> to vector<4x8x8xf32>
    %16 = arith.mulf %14, %15 : vector<4x8x8xf32>
    %cst_7 = arith.constant dense<0xFF800000> : vector<4x8xf32>
    %17 = vector.multi_reduction <maximumf>, %16, %cst_7 [2] : vector<4x8x8xf32> to vector<4x8xf32>
    %18 = vector.shape_cast %17 : vector<4x8xf32> to vector<4x8x1xf32>
    %19 = vector.broadcast %18 : vector<4x8x1xf32> to vector<4x8x8xf32>
    %20 = arith.subf %16, %19 : vector<4x8x8xf32>
    %21 = math.exp %20 : vector<4x8x8xf32>
    %cst_8 = arith.constant dense<0.000000e+00> : vector<4x8xf32>
    %22 = vector.multi_reduction <add>, %21, %cst_8 [2] : vector<4x8x8xf32> to vector<4x8xf32>
    %23 = vector.shape_cast %22 : vector<4x8xf32> to vector<4x8x1xf32>
    %24 = tpu.reciprocal %23 : vector<4x8x1xf32> -> vector<4x8x1xf32>
    %25 = vector.broadcast %24 : vector<4x8x1xf32> to vector<4x8x8xf32>
    %26 = arith.mulf %21, %25 : vector<4x8x8xf32>
    %27 = vector.shape_cast %9 : vector<4x8xf32> to vector<4x1x8xf32>
    %28 = vector.broadcast %27 : vector<4x1x8xf32> to vector<4x8x8xf32>
    %29 = arith.mulf %26, %28 : vector<4x8x8xf32>
    %cst_9 = arith.constant dense<0.000000e+00> : vector<4x8xf32>
    %30 = vector.multi_reduction <add>, %29, %cst_9 [2] : vector<4x8x8xf32> to vector<4x8xf32>
    %c0_10 = arith.constant 0 : index
    %c0_11 = arith.constant 0 : index
    %31 = vector.load %arg4[%c0_10, %c0_11] : memref<8x8xf32, #tpu.memory_space<vmem>>, vector<8x8xf32>
    %cst_12 = arith.constant dense<0.000000e+00> : vector<4x8xf32>
    %32 = tpu.matmul %30, %31, %cst_12 {dimension_numbers = #tpu.dot_dimension_numbers<[1], [1], [0], [0], [0, 0, 1, 0], [], []>} : vector<4x8xf32>, vector<8x8xf32>, vector<4x8xf32> -> vector<4x8xf32>
    %c0_13 = arith.constant 0 : index
    %c0_14 = arith.constant 0 : index
    %33 = vector.load %arg5[%c0_13, %c0_14] : memref<1x8xf32, #tpu.memory_space<vmem>>, vector<1x8xf32>
    %34 = vector.broadcast %33 : vector<1x8xf32> to vector<4x8xf32>
    %35 = arith.addf %32, %34 : vector<4x8xf32>
    %c0_15 = arith.constant 0 : index
    %c0_16 = arith.constant 0 : index
    %c0_17 = arith.constant 0 : index
    %36 = vector.load %arg6[%c0_15, %c0_16, %c0_17] : memref<1x4x8xf32, #tpu.memory_space<vmem>>, vector<1x4x8xf32>
    %37 = vector.shape_cast %36 : vector<1x4x8xf32> to vector<4x8xf32>
    %38 = vector.shape_cast %35 : vector<4x8xf32> to vector<1x4x8xf32>
    tpu.vector_store %arg6[%c0_15, %c0_16, %c0_17], %38 {strides = array<i32>} : memref<1x4x8xf32, #tpu.memory_space<vmem>>, vector<1x4x8xf32>,
    return
  }
  func.func @transform_0(%arg0: i32) -> (i32, i32, i32) {
    %c0_i32 = arith.constant 0 : i32
    %c0_i32_0 = arith.constant 0 : i32
    %c0_i32_1 = arith.constant 0 : i32
    return %arg0, %c0_i32, %c0_i32_0 : i32, i32, i32
  }
  func.func @transform_1(%arg0: i32) -> (i32, i32) {
    %c0_i32 = arith.constant 0 : i32
    %c0_i32_0 = arith.constant 0 : i32
    %c0_i32_1 = arith.constant 0 : i32
    return %c0_i32, %c0_i32_0 : i32, i32
  }
  func.func @transform_2(%arg0: i32) -> (i32, i32) {
    %c0_i32 = arith.constant 0 : i32
    %c0_i32_0 = arith.constant 0 : i32
    %c0_i32_1 = arith.constant 0 : i32
    return %c0_i32, %c0_i32_0 : i32, i32
  }
  func.func @transform_3(%arg0: i32) -> (i32, i32) {
    %c0_i32 = arith.constant 0 : i32
    %c0_i32_0 = arith.constant 0 : i32
    %c0_i32_1 = arith.constant 0 : i32
    return %c0_i32, %c0_i32_0 : i32, i32
  }
  func.func @transform_4(%arg0: i32) -> (i32, i32) {
    %c0_i32 = arith.constant 0 : i32
    %c0_i32_0 = arith.constant 0 : i32
    %c0_i32_1 = arith.constant 0 : i32
    return %c0_i32, %c0_i32_0 : i32, i32
  }
  func.func @transform_5(%arg0: i32) -> (i32, i32, i32) {
    %c0_i32 = arith.constant 0 : i32
    %c0_i32_0 = arith.constant 0 : i32
    %c0_i32_1 = arith.constant 0 : i32
    return %arg0, %c0_i32, %c0_i32_0 : i32, i32, i32
  }
}

</mosaic_0001>

<llo_original>
// kernel: tile.8
$region0: #{tile.8}
  #allocation0 [shape = 's32[1]{0}', space=sflag, size = 0x4, scoped, tag = 'scoped memory for tile.8']
  %s0 = inlined_call_operand.vmem [shape: f32[4], index: 0, kind: input, shape index: {}]
  %s1 = inlined_call_operand.vmem [shape: f32[2,4], index: 1, kind: output, shape index: {}]
  // Predicated region
  $region2: #{tile.8} parent=0 // pred_check
    _
  $region3: #{tile.8} parent=0 // pred_check_branch
    %3 = sbr.rel (0) target = $region5
  $region4: #{tile.8} parent=0 // pred_region
    _
  $region5: #{tile.8} parent=0 // pred_fallthru
    _
  %v4 = vld [vmem:[%s0] ss:$0 sm:$0xff]
  %5 = vst [vmem:[%s1] sm:$0x3] %v4

// kernel: tile.9
$region0: #{tile.9}
  %s0 = inlined_call_operand.vmem [shape: f32[2,4], index: 0, kind: input, shape index: {}]
  %s1 = inlined_call_operand.vmem [shape: f32[1,8], index: 1, kind: output, shape index: {}]
  $region1: #{tile.9} parent=0
    #allocation0 [shape = 'u8[4096]{0}', space=vmem, size = 0x1000, scoped, tag = 'scoped mem for output reshape']
    #allocation1 [shape = 'u8[4096]{0}', space=vmem, size = 0x1000, scoped, tag = 'scoped mem for input reshape']
    %s3 = sshllo.u32 0, 2
    %v4 = vld [vmem:[%s0] sm:%s3]
    %5 = vst [vmem:[#allocation1] sm:%s3] %v4
    %v6 = vld [vmem:[#allocation1] sm:$0x1]
    %vm7 = vcmask 31744
    %8 = vst.msk [vmem:[#allocation0] sm:$0x1] %vm7, %v6
    %s9 = scalar_lea.vmem [#allocation1], 1
    %v10 = vld [vmem:[%s9] sm:$0x1]
    %11 = vrot.lane.b32.xlu0 %v10, 4
    %v12 = vpop.permute.xlu0 %11
    %vm13 = vcmask 64544
    %14 = vst.msk [vmem:[#allocation0] sm:$0x1] %vm13, %v12
    %s16 = sshllo.u32 0, 1
    %v18 = vld [vmem:[#allocation0] sm:%s16]
    %s19 = sshllo.u32 0, 1
    %20 = vst [vmem:[%s1] sm:%s19] %v18

// kernel: encoder_layer_forward.1
$region0: #{encoder_layer_forward.1}
  #allocation0 [shape = 'u32[]', space=smem, size = 0x4, offset = 0x4, fixed_abs, tag = 'smem constant byte address 0x4 - core index']
  #allocation1 [shape = 'u32[144,128]{1,0:T(1,128)}', space=vmem, size = 0x12000, scoped, tag = 'internal scratch']
  %s0 = inlined_call_operand.vmem [shape: f32[2,8,4], index: 0, kind: input, shape index: {}]
  %s1 = inlined_call_operand.vmem [shape: f32[12,4], index: 1, kind: input, shape index: {}]
  %s2 = inlined_call_operand.vmem [shape: f32[12,1], index: 2, kind: input, shape index: {}]
  %s3 = inlined_call_operand.vmem [shape: f32[8,8], index: 3, kind: input, shape index: {}]
  %s4 = inlined_call_operand.vmem [shape: f32[1,8], index: 4, kind: input, shape index: {}]
  %s5 = inlined_call_operand.vmem [shape: f32[2,4,8], index: 5, kind: output, shape index: {}]
  %s6 = sld [smem:[#allocation0]]
  $region53: #{encoder_layer_forward.1} parent=0
    _
  %s8 = ssub.s32 1, %s6
  %s9 = scalar_select 0, %s8, %s6
  loop: start=0, step=1, limit=4
  $region2: #{encoder_layer_forward.1} parent=0 // loop_pre_header
    _
  $region3: #{encoder_layer_forward.1} parent=0 // loop_header
    %s11 = sphi 0, %s15
    %p12 = scmp.ge.s32.totalorder %s11, 4
    %s21 = sphi 0, %s23
    %s24 = sphi 0, %s21
    %s25 = sphi 0, %s24
    %s41 = sphi 0, %s25
    %s45 = sphi 0, %s45
    %s47 = sphi 0, %s45
    %s48 = sphi 0, %s47
    %s62 = sphi 0, %s48
    %s66 = sphi 0, %s66
    %s68 = sphi 0, %s66
    %s69 = sphi 0, %s68
    %s83 = sphi 0, %s69
    %s87 = sphi 0, %s87
    %s89 = sphi 0, %s87
    %s90 = sphi 0, %s89
    %s104 = sphi 0, %s90
    %s108 = sphi 0, %s108
    %s110 = sphi 0, %s108
    %s111 = sphi 0, %s110
    %s125 = sphi 0, %s111
    %s131 = sphi 0, %s133
    %s134 = sphi 0, %s131
    %s135 = sphi 0, %s134
    %s151 = sphi 0, %s135
  $region4: #{encoder_layer_forward.1} parent=0 // loop_header_branch
    %14 = sbr.rel (%p12) target = $region8
  $region5: #{encoder_layer_forward.1} parent=0 // loop_body
    %s16 = ssub.s32 %s11, 1
    %s17 = ssub.s32 %s11, 2
    %s18 = sadd.s32 %s11, 1
    %s19 = ssub.s32 %s11, %s18
    %p20 = scmp.eq.s32.totalorder %s19, 0
    %s22 = sadd.s32 %s21, 1
    %s23 = scalar_select %p20, %s21, %s22
    %p26 = pneg %p20
    %p27 = scmp.eq.s32.totalorder %s11, 1
    %p28 = por %p26, %p27
    %p29 = scmp.ne.s32.totalorder %s21, %s24
    %p30 = scmp.eq.s32.totalorder %s11, 0
    %p31 = por %p29, %p30
    %p32 = scmp.ne.s32.totalorder %s21, %s24
    %p33 = scmp.eq.s32.totalorder %s16, 1
    %p34 = por %p32, %p33
    %p35 = scmp.ne.s32.totalorder %s24, %s25
    %p36 = scmp.eq.s32.totalorder %s16, 0
    %p37 = por %p35, %p36
    %p38 = scmp.ne.s32.totalorder %s24, %s25
    %p39 = scmp.eq.s32.totalorder %s17, 1
    %p40 = por %p38, %p39
    %p42 = scmp.ne.s32.totalorder %s25, %s41
    %p43 = scmp.eq.s32.totalorder %s17, 0
    %p44 = por %p42, %p43
    %s46 = sadd.s32 %s45, 1
    %p49 = scmp.eq.s32.totalorder %s11, 1
    %p50 = scmp.ne.s32.totalorder %s45, %s47
    %p51 = scmp.eq.s32.totalorder %s11, 0
    %p52 = por %p50, %p51
    %p53 = scmp.ne.s32.totalorder %s45, %s47
    %p54 = scmp.eq.s32.totalorder %s16, 1
    %p55 = por %p53, %p54
    %p56 = scmp.ne.s32.totalorder %s47, %s48
    %p57 = scmp.eq.s32.totalorder %s16, 0
    %p58 = por %p56, %p57
    %p59 = scmp.ne.s32.totalorder %s47, %s48
    %p60 = scmp.eq.s32.totalorder %s17, 1
    %p61 = por %p59, %p60
    %p63 = scmp.ne.s32.totalorder %s48, %s62
    %p64 = scmp.eq.s32.totalorder %s17, 0
    %p65 = por %p63, %p64
    %s67 = sadd.s32 %s66, 1
    %p70 = scmp.eq.s32.totalorder %s11, 1
    %p71 = scmp.ne.s32.totalorder %s66, %s68
    %p72 = scmp.eq.s32.totalorder %s11, 0
    %p73 = por %p71, %p72
    %p74 = scmp.ne.s32.totalorder %s66, %s68
    %p75 = scmp.eq.s32.totalorder %s16, 1
    %p76 = por %p74, %p75
    %p77 = scmp.ne.s32.totalorder %s68, %s69
    %p78 = scmp.eq.s32.totalorder %s16, 0
    %p79 = por %p77, %p78
    %p80 = scmp.ne.s32.totalorder %s68, %s69
    %p81 = scmp.eq.s32.totalorder %s17, 1
    %p82 = por %p80, %p81
    %p84 = scmp.ne.s32.totalorder %s69, %s83
    %p85 = scmp.eq.s32.totalorder %s17, 0
    %p86 = por %p84, %p85
    %s88 = sadd.s32 %s87, 1
    %p91 = scmp.eq.s32.totalorder %s11, 1
    %p92 = scmp.ne.s32.totalorder %s87, %s89
    %p93 = scmp.eq.s32.totalorder %s11, 0
    %p94 = por %p92, %p93
    %p95 = scmp.ne.s32.totalorder %s87, %s89
    %p96 = scmp.eq.s32.totalorder %s16, 1
    %p97 = por %p95, %p96
    %p98 = scmp.ne.s32.totalorder %s89, %s90
    %p99 = scmp.eq.s32.totalorder %s16, 0
    %p100 = por %p98, %p99
    %p101 = scmp.ne.s32.totalorder %s89, %s90
    %p102 = scmp.eq.s32.totalorder %s17, 1
    %p103 = por %p101, %p102
    %p105 = scmp.ne.s32.totalorder %s90, %s104
    %p106 = scmp.eq.s32.totalorder %s17, 0
    %p107 = por %p105, %p106
    %s109 = sadd.s32 %s108, 1
    %p112 = scmp.eq.s32.totalorder %s11, 1
    %p113 = scmp.ne.s32.totalorder %s108, %s110
    %p114 = scmp.eq.s32.totalorder %s11, 0
    %p115 = por %p113, %p114
    %p116 = scmp.ne.s32.totalorder %s108, %s110
    %p117 = scmp.eq.s32.totalorder %s16, 1
    %p118 = por %p116, %p117
    %p119 = scmp.ne.s32.totalorder %s110, %s111
    %p120 = scmp.eq.s32.totalorder %s16, 0
    %p121 = por %p119, %p120
    %p122 = scmp.ne.s32.totalorder %s110, %s111
    %p123 = scmp.eq.s32.totalorder %s17, 1
    %p124 = por %p122, %p123
    %p126 = scmp.ne.s32.totalorder %s111, %s125
    %p127 = scmp.eq.s32.totalorder %s17, 0
    %p128 = por %p126, %p127
    %s129 = ssub.s32 %s11, %s18
    %p130 = scmp.eq.s32.totalorder %s129, 0
    %s132 = sadd.s32 %s131, 1
    %s133 = scalar_select %p130, %s131, %s132
    %p136 = pneg %p130
    %p137 = scmp.eq.s32.totalorder %s11, 1
    %p138 = por %p136, %p137
    %p139 = scmp.ne.s32.totalorder %s131, %s134
    %p140 = scmp.eq.s32.totalorder %s11, 0
    %p141 = por %p139, %p140
    %p142 = scmp.ne.s32.totalorder %s131, %s134
    %p143 = scmp.eq.s32.totalorder %s16, 1
    %p144 = por %p142, %p143
    %p145 = scmp.ne.s32.totalorder %s134, %s135
    %p146 = scmp.eq.s32.totalorder %s16, 0
    %p147 = por %p145, %p146
    %p148 = scmp.ne.s32.totalorder %s134, %s135
    %p149 = scmp.eq.s32.totalorder %s17, 1
    %p150 = por %p148, %p149
    %p152 = scmp.ne.s32.totalorder %s135, %s151
    %p153 = scmp.eq.s32.totalorder %s17, 0
    %p154 = por %p152, %p153
    %p155 = scmp.le.s32.totalorder 1, %s11
    %p156 = scmp.lt.s32.totalorder %s11, 3
    %p157 = pnand %p155, %p156
    %p158 = pneg %p157
    // Predicated region
    $region9: #{encoder_layer_forward.1} parent=5 // pred_check
      _
    $region10: #{encoder_layer_forward.1} parent=5 // pred_check_branch
      %160 = sbr.rel (%p157) target = $region12
    $region11: #{encoder_layer_forward.1} parent=5 // pred_region
      %s161 = ssub.s32 %s11, 1
      // Predicated region
      $region13: #{encoder_layer_forward.1} parent=11 // pred_check
        %p162 = pneg %p58
      $region14: #{encoder_layer_forward.1} parent=11 // pred_check_branch
        %164 = sbr.rel (%p162) target = $region16
      $region15: #{encoder_layer_forward.1} parent=11 // pred_region
        _
      $region16: #{encoder_layer_forward.1} parent=11 // pred_fallthru
        _
      // Predicated region
      $region17: #{encoder_layer_forward.1} parent=11 // pred_check
        %p165 = pneg %p79
      $region18: #{encoder_layer_forward.1} parent=11 // pred_check_branch
        %167 = sbr.rel (%p165) target = $region20
      $region19: #{encoder_layer_forward.1} parent=11 // pred_region
        _
      $region20: #{encoder_layer_forward.1} parent=11 // pred_fallthru
        _
      // Predicated region
      $region21: #{encoder_layer_forward.1} parent=11 // pred_check
        %p168 = pneg %p100
      $region22: #{encoder_layer_forward.1} parent=11 // pred_check_branch
        %170 = sbr.rel (%p168) target = $region24
      $region23: #{encoder_layer_forward.1} parent=11 // pred_region
        _
      $region24: #{encoder_layer_forward.1} parent=11 // pred_fallthru
        _
      // Predicated region
      $region25: #{encoder_layer_forward.1} parent=11 // pred_check
        %p171 = pneg %p121
      $region26: #{encoder_layer_forward.1} parent=11 // pred_check_branch
        %173 = sbr.rel (%p171) target = $region28
      $region27: #{encoder_layer_forward.1} parent=11 // pred_region
        _
      $region28: #{encoder_layer_forward.1} parent=11 // pred_fallthru
        _
    $region12: #{encoder_layer_forward.1} parent=5 // pred_fallthru
      _
    %p174 = scmp.lt.s32.totalorder %s11, 2
    // Predicated region
    $region29: #{encoder_layer_forward.1} parent=5 // pred_check
      %p175 = pneg %p174
    $region30: #{encoder_layer_forward.1} parent=5 // pred_check_branch
      %177 = sbr.rel (%p175) target = $region32
    $region31: #{encoder_layer_forward.1} parent=5 // pred_region
      // Predicated region
      $region33: #{encoder_layer_forward.1} parent=31 // pred_check
        %p178 = pneg %p31
      $region34: #{encoder_layer_forward.1} parent=31 // pred_check_branch
        %180 = sbr.rel (%p178) target = $region36
      $region35: #{encoder_layer_forward.1} parent=31 // pred_region
        %p181 = scmp.lt.s32.totalorder %s11, 1
        %s182 = scalar_select %p181, %s11, 1
        %s183 = smul.addr %s182, 8
        %s184 = scalar_lea.vmem %s0, %s183
      $region36: #{encoder_layer_forward.1} parent=31 // pred_fallthru
        _
    $region32: #{encoder_layer_forward.1} parent=5 // pred_fallthru
      _
    %p185 = scmp.le.s32.totalorder 1, %s11
    %p186 = scmp.lt.s32.totalorder %s11, 3
    %p187 = pnand %p185, %p186
    %p188 = pneg %p187
    // Predicated region
    $region37: #{encoder_layer_forward.1} parent=5 // pred_check
      _
    $region38: #{encoder_layer_forward.1} parent=5 // pred_check_branch
      %190 = sbr.rel (%p187) target = $region40
    $region39: #{encoder_layer_forward.1} parent=5 // pred_region
      %s191 = ssub.s32 %s11, 1
      %p192 = scmp.lt.s32.totalorder %s16, 1
      %s193 = scalar_select %p192, %s16, 1
      %s194 = smul.addr %s193, 8
      %s195 = scalar_lea.vmem %s0, %s194
      %p196 = pneg %p37
      %p197 = pneg %p34
      %p198 = pneg %p58
      %p199 = pneg %p55
      %p200 = pneg %p79
      %p201 = pneg %p76
      %p202 = pneg %p100
      %p203 = pneg %p97
      %p204 = pneg %p121
      %p205 = pneg %p118
      %p206 = pneg %p147
      %p207 = pneg %p144
      %p208 = scmp.lt.s32.totalorder %s16, 1
      %s209 = scalar_select %p208, %s16, 1
      %s210 = smul.addr %s209, 4
      %s211 = scalar_lea.vmem %s5, %s210
      %p212 = scmp.lt.s32.totalorder %s16, 1
      %s213 = scalar_select %p212, %s16, 1
      %s214 = smul.addr %s213, 8
      %s215 = scalar_lea.vmem %s0, %s214
      %p216 = scmp.lt.s32.totalorder %s16, 1
      %s217 = scalar_select %p216, %s16, 1
      %s218 = smul.addr %s217, 4
      %s219 = scalar_lea.vmem %s5, %s218
      %v220 = vld [vmem:[%s215] sm:$0xff]
      %v221 = vld [vmem:[%s1] sm:$0xff]
      %v222 = vld [vmem:[%s1 + $0x8] sm:$0xf]
      %v223 = vld [vmem:[%s2] sm:$0xff]
      %v224 = vld [vmem:[%s2 + $0x8] sm:$0xf]
      %226 = vset.pattern.permute.xlu0 0
      %227 = vperm.xlu0 %226, %v223
      %v228 = vpop.permute.xlu0 %227
      %231 = vset.pattern.permute.xlu0 0
      %232 = vperm.xlu0 %231, %v224
      %v233 = vpop.permute.xlu0 %232
      %vm235 = vcmask 31744
      %v237 = vsel %vm235, %v221, 0
      %v240 = vsel %vm235, %v222, 0
      %v243 = vsel %vm235, %v220, 0
      %245 = vmatprep.subr.mxu0 0.0
      %246 = vmatpush1.xpose.msra.mxu0 %v243
      %247 = vmatprep.subr.mxu0 0.0
      %248 = vmatpush1.xpose.msra.mxu0 0.0
      %249 = vmatprep.subr.mxu0 0.0
      %250 = vmatpush1.xpose.msra.mxu0 0.0
      %251 = vmatprep.subr.mxu0 0.0
      %252 = vmatpush1.xpose.msra.mxu0 0.0
      %253 = vmatprep.subr.mxu0 0.0
      %254 = vmatpush1.xpose.msra.mxu0 0.0
      %255 = vmatprep.subr.mxu0 0.0
      %256 = vmatpush1.xpose.msra.mxu0 0.0
      %257 = vmatprep.subr.mxu0 0.0
      %258 = vmatpush1.xpose.msra.mxu0 0.0
      %259 = vmatprep.subr.mxu0 0.0
      %260 = vmatpush1.xpose.msra.mxu0 0.0
      %261 = vmatprep.subr.mxu0 0.0
      %262 = vmatpush1.xpose.msra.mxu0 0.0
      %263 = vmatprep.subr.mxu0 0.0
      %264 = vmatpush1.xpose.msra.mxu0 0.0
      %265 = vmatprep.subr.mxu0 0.0
      %266 = vmatpush1.xpose.msra.mxu0 0.0
      %267 = vmatprep.subr.mxu0 0.0
      %268 = vmatpush1.xpose.msra.mxu0 0.0
      %269 = vmatprep.subr.mxu0 0.0
      %270 = vmatpush1.xpose.msra.mxu0 0.0
      %271 = vmatprep.subr.mxu0 0.0
      %272 = vmatpush1.xpose.msra.mxu0 0.0
      %273 = vmatprep.subr.mxu0 0.0
      %274 = vmatpush1.xpose.msra.mxu0 0.0
      %275 = vmatprep.subr.mxu0 0.0
      %276 = vmatpush1.xpose.msra.mxu0 0.0
      %277 = vmatprep.subr.mxu0 0.0
      %278 = vmatpush1.xpose.msra.mxu0 0.0
      %279 = vmatprep.subr.mxu0 0.0
      %280 = vmatpush1.xpose.msra.mxu0 0.0
      %281 = vmatprep.subr.mxu0 0.0
      %282 = vmatpush1.xpose.msra.mxu0 0.0
      %283 = vmatprep.subr.mxu0 0.0
      %284 = vmatpush1.xpose.msra.mxu0 0.0
      %285 = vmatprep.subr.mxu0 0.0
      %286 = vmatpush1.xpose.msra.mxu0 0.0
      %287 = vmatprep.subr.mxu0 0.0
      %288 = vmatpush1.xpose.msra.mxu0 0.0
      %289 = vmatprep.subr.mxu0 0.0
      %290 = vmatpush1.xpose.msra.mxu0 0.0
      %291 = vmatprep.subr.mxu0 0.0
      %292 = vmatpush1.xpose.msra.mxu0 0.0
      %293 = vmatprep.subr.mxu0 0.0
      %294 = vmatpush1.xpose.msra.mxu0 0.0
      %295 = vmatprep.subr.mxu0 0.0
      %296 = vmatpush1.xpose.msra.mxu0 0.0
      %297 = vmatprep.subr.mxu0 0.0
      %298 = vmatpush1.xpose.msra.mxu0 0.0
      %299 = vmatprep.subr.mxu0 0.0
      %300 = vmatpush1.xpose.msra.mxu0 0.0
      %301 = vmatprep.subr.mxu0 0.0
      %302 = vmatpush1.xpose.msra.mxu0 0.0
      %303 = vmatprep.subr.mxu0 0.0
      %304 = vmatpush1.xpose.msra.mxu0 0.0
      %305 = vmatprep.subr.mxu0 0.0
      %306 = vmatpush1.xpose.msra.mxu0 0.0
      %307 = vmatprep.subr.mxu0 0.0
      %308 = vmatpush1.xpose.msra.mxu0 0.0
      %309 = vmatprep.mubr.f32.mxu0 0.0
      %310 = vmatmul.mubr.f32.gmra.mrb[0].mxu0 %v237
      %v311 = vpop.f32.mrb[0].mxu0
      %v312 = vadd.f32 %v228, %v311
      %v313 = vpop.f32.mrb[0].mxu0
      %314 = vmatprep.mubr.f32.mxu0 0.0
      %315 = vmatmul.mubr.f32.gmra.mrb[0].mxu0 %v240
      %v316 = vpop.f32.mrb[0].mxu0
      %v317 = vadd.f32 %v233, %v316
      %v318 = vpop.f32.mrb[0].mxu0
      %319 = vdwg.mxu0
      %v320 = vlaneseq
      %v321 = vshrl.u32 %v320, 7
      %v322 = vsub.s32 0, %v321
      %v323 = vrot.slane %v312, %v322
      %325 = vbcast.lane.b32.xlu0 %v323, 256
      %v326 = vpop.permute.xlu0 %325
      %v327 = vlaneseq
      %v328 = vshrl.u32 %v327, 7
      %v329 = vsub.s32 1, %v328
      %v330 = vrot.slane %v312, %v329
      %332 = vbcast.lane.b32.xlu0 %v330, 256
      %v333 = vpop.permute.xlu0 %332
      %v334 = vlaneseq
      %v335 = vshrl.u32 %v334, 7
      %v336 = vsub.s32 2, %v335
      %v337 = vrot.slane %v312, %v336
      %339 = vbcast.lane.b32.xlu0 %v337, 256
      %v340 = vpop.permute.xlu0 %339
      %v341 = vlaneseq
      %v342 = vshrl.u32 %v341, 7
      %v343 = vsub.s32 3, %v342
      %v344 = vrot.slane %v312, %v343
      %346 = vbcast.lane.b32.xlu0 %v344, 256
      %v347 = vpop.permute.xlu0 %346
      %v349 = vcombine.high %v312, %v312
      %v351 = vunpack.c.l.s4 1966171168
      %v352 = vunpack.c.0.s8 %v351
      %v353 = vlaneseq
      %v354 = vshrl.u32 %v353, 7
      %v355 = vsub.s32 %v352, %v354
      %v356 = vrot.slane %v349, %v355
      %v357 = vcombine.high %v356, %v356
      %v359 = vunpack.c.l.s4 1966171168
      %v360 = vunpack.c.0.s8 %v359
      %v361 = vlaneseq
      %v362 = vshrl.u32 %v361, 7
      %v363 = vsub.s32 %v360, %v362
      %v364 = vrot.slane %v356, %v363
      %v366 = vunpack.c.l.s4 1966171168
      %v367 = vunpack.c.0.s8 %v366
      %v368 = vlaneseq
      %v369 = vshrl.u32 %v368, 7
      %v370 = vsub.s32 %v367, %v369
      %v371 = vrot.slane %v357, %v370
      %v372 = vcombine.high %v364, %v364
      %v373 = vcombine.high %v371, %v371
      %v374 = vlaneseq
      %v375 = vshrl.u32 %v374, 7
      %v376 = vsub.s32 0, %v375
      %v377 = vrot.slane %v364, %v376
      %v378 = vlaneseq
      %v379 = vshrl.u32 %v378, 7
      %v380 = vsub.s32 0, %v379
      %v381 = vrot.slane %v371, %v380
      %v382 = vlaneseq
      %v383 = vshrl.u32 %v382, 7
      %v384 = vsub.s32 0, %v383
      %v385 = vrot.slane %v372, %v384
      %v386 = vlaneseq
      %v387 = vshrl.u32 %v386, 7
      %v388 = vsub.s32 0, %v387
      %v389 = vrot.slane %v373, %v388
      %v394 = vmul.f32 %v326, %v377
      %v395 = vmul.f32 %v333, %v381
      %v396 = vmul.f32 %v340, %v385
      %v397 = vmul.f32 %v347, %v389
      %vm398 = vcmask 64512
      %v399 = vsel %vm398, %v394, -inf
      %400 = vmax.xlane.f32.xlu0 %v399
      %v401 = vpop.xlane.xlu0 %400
      %v402 = vsel %vm398, %v395, -inf
      %403 = vmax.xlane.f32.xlu0 %v402
      %v404 = vpop.xlane.xlu0 %403
      %v405 = vsel %vm398, %v396, -inf
      %406 = vmax.xlane.f32.xlu0 %v405
      %v407 = vpop.xlane.xlu0 %406
      %v408 = vsel %vm398, %v397, -inf
      %409 = vmax.xlane.f32.xlu0 %v408
      %v410 = vpop.xlane.xlu0 %409
      %v411 = vsub.f32 %v394, %v401
      %v412 = vsub.f32 %v395, %v404
      %v413 = vsub.f32 %v396, %v407
      %v414 = vsub.f32 %v397, %v410
      %v415 = vmul.f32 %v411, 1.442695
      %v416 = vpow.pop %v415
      %v417 = vmul.f32 %v412, 1.442695
      %v418 = vpow.pop %v417
      %v419 = vmul.f32 %v413, 1.442695
      %v420 = vpow.pop %v419
      %v421 = vmul.f32 %v414, 1.442695
      %v422 = vpow.pop %v421
      %v423 = vsel %vm398, %v416, 0.0
      %424 = vadd.xlane.f32.xlu0 %v423
      %v425 = vpop.xlane.xlu0 %424
      %v426 = vsel %vm398, %v418, 0.0
      %427 = vadd.xlane.f32.xlu0 %v426
      %v428 = vpop.xlane.xlu0 %427
      %v429 = vsel %vm398, %v420, 0.0
      %430 = vadd.xlane.f32.xlu0 %v429
      %v431 = vpop.xlane.xlu0 %430
      %v432 = vsel %vm398, %v422, 0.0
      %433 = vadd.xlane.f32.xlu0 %v432
      %v434 = vpop.xlane.xlu0 %433
      %v435 = vrcp.pop %v425
      %v436 = vrcp.pop %v428
      %v437 = vrcp.pop %v431
      %v438 = vrcp.pop %v434
      %v439 = vmul.f32 %v416, %v435
      %v440 = vmul.f32 %v418, %v436
      %v441 = vmul.f32 %v420, %v437
      %v442 = vmul.f32 %v422, %v438
      %v445 = vunpack.c.l.s4 1966171168
      %v446 = vunpack.c.0.s8 %v445
      %v447 = vlaneseq
      %v448 = vshrl.u32 %v447, 7
      %v449 = vsub.s32 %v446, %v448
      %v450 = vrot.slane %v317, %v449
      %v451 = vcombine.high %v450, %v450
      %v453 = vunpack.c.l.s4 1966171168
      %v454 = vunpack.c.0.s8 %v453
      %v455 = vlaneseq
      %v456 = vshrl.u32 %v455, 7
      %v457 = vsub.s32 %v454, %v456
      %v458 = vrot.slane %v450, %v457
      %v460 = vunpack.c.l.s4 1966171168
      %v461 = vunpack.c.0.s8 %v460
      %v462 = vlaneseq
      %v463 = vshrl.u32 %v462, 7
      %v464 = vsub.s32 %v461, %v463
      %v465 = vrot.slane %v451, %v464
      %v466 = vcombine.high %v458, %v458
      %v467 = vcombine.high %v465, %v465
      %v468 = vlaneseq
      %v469 = vshrl.u32 %v468, 7
      %v470 = vsub.s32 0, %v469
      %v471 = vrot.slane %v458, %v470
      %v472 = vlaneseq
      %v473 = vshrl.u32 %v472, 7
      %v474 = vsub.s32 0, %v473
      %v475 = vrot.slane %v465, %v474
      %v476 = vlaneseq
      %v477 = vshrl.u32 %v476, 7
      %v478 = vsub.s32 0, %v477
      %v479 = vrot.slane %v466, %v478
      %v480 = vlaneseq
      %v481 = vshrl.u32 %v480, 7
      %v482 = vsub.s32 0, %v481
      %v483 = vrot.slane %v467, %v482
      %v488 = vmul.f32 %v439, %v471
      %v489 = vmul.f32 %v440, %v475
      %v490 = vmul.f32 %v441, %v479
      %v491 = vmul.f32 %v442, %v483
      %v492 = vsel %vm398, %v488, 0.0
      %493 = vadd.xlane.f32.xlu0 %v492
      %v494 = vpop.xlane.xlu0 %493
      %v495 = vsel %vm398, %v489, 0.0
      %496 = vadd.xlane.f32.xlu0 %v495
      %v497 = vpop.xlane.xlu0 %496
      %v498 = vsel %vm398, %v490, 0.0
      %499 = vadd.xlane.f32.xlu0 %v498
      %v500 = vpop.xlane.xlu0 %499
      %v501 = vsel %vm398, %v491, 0.0
      %502 = vadd.xlane.f32.xlu0 %v501
      %v503 = vpop.xlane.xlu0 %502
      %v504 = vld [vmem:[%s3] sm:$0xff]
      %v505 = vld [vmem:[%s4] sm:$0x1]
      %v507 = vlaneseq
      %v508 = vshrl.u32 %v507, 7
      %v509 = vsub.s32 0, %v508
      %v510 = vrot.slane %v505, %v509
      %v516 = vlaneseq
      %v517 = vand.u32 %v516, 127
      %v518 = vlaneseq
      %v519 = vshrl.u32 %v518, 7
      %v520 = vsub.s32 %v517, %v519
      %v521 = vrot.slane %v494, %v520
      %v522 = vlaneseq
      %v523 = vshrl.u32 %v522, 7
      %v524 = vsub.s32 %v517, %v523
      %v525 = vrot.slane %v497, %v524
      %v526 = vlaneseq
      %v527 = vshrl.u32 %v526, 7
      %v528 = vsub.s32 %v517, %v527
      %v529 = vrot.slane %v500, %v528
      %v530 = vlaneseq
      %v531 = vshrl.u32 %v530, 7
      %v532 = vsub.s32 %v517, %v531
      %v533 = vrot.slane %v503, %v532
      %vm534 = vcmask 1041409
      %v535 = vsel %vm534, %v525, %v521
      %vm536 = vcmask 1042434
      %v537 = vsel %vm536, %v529, %v535
      %vm538 = vcmask 1043459
      %v539 = vsel %vm538, %v533, %v537
      %v540 = vsel %vm398, %v539, 0
      %v543 = vsel %vm398, %v504, 0
      %545 = vmatprep.subr.mxu0 0.0
      %546 = vmatpush1.xpose.msra.mxu0 %v543
      %547 = vmatprep.subr.mxu0 0.0
      %548 = vmatpush1.xpose.msra.mxu0 0.0
      %549 = vmatprep.subr.mxu0 0.0
      %550 = vmatpush1.xpose.msra.mxu0 0.0
      %551 = vmatprep.subr.mxu0 0.0
      %552 = vmatpush1.xpose.msra.mxu0 0.0
      %553 = vmatprep.subr.mxu0 0.0
      %554 = vmatpush1.xpose.msra.mxu0 0.0
      %555 = vmatprep.subr.mxu0 0.0
      %556 = vmatpush1.xpose.msra.mxu0 0.0
      %557 = vmatprep.subr.mxu0 0.0
      %558 = vmatpush1.xpose.msra.mxu0 0.0
      %559 = vmatprep.subr.mxu0 0.0
      %560 = vmatpush1.xpose.msra.mxu0 0.0
      %561 = vmatprep.subr.mxu0 0.0
      %562 = vmatpush1.xpose.msra.mxu0 0.0
      %563 = vmatprep.subr.mxu0 0.0
      %564 = vmatpush1.xpose.msra.mxu0 0.0
      %565 = vmatprep.subr.mxu0 0.0
      %566 = vmatpush1.xpose.msra.mxu0 0.0
      %567 = vmatprep.subr.mxu0 0.0
      %568 = vmatpush1.xpose.msra.mxu0 0.0
      %569 = vmatprep.subr.mxu0 0.0
      %570 = vmatpush1.xpose.msra.mxu0 0.0
      %571 = vmatprep.subr.mxu0 0.0
      %572 = vmatpush1.xpose.msra.mxu0 0.0
      %573 = vmatprep.subr.mxu0 0.0
      %574 = vmatpush1.xpose.msra.mxu0 0.0
      %575 = vmatprep.subr.mxu0 0.0
      %576 = vmatpush1.xpose.msra.mxu0 0.0
      %577 = vmatprep.subr.mxu0 0.0
      %578 = vmatpush1.xpose.msra.mxu0 0.0
      %579 = vmatprep.subr.mxu0 0.0
      %580 = vmatpush1.xpose.msra.mxu0 0.0
      %581 = vmatprep.subr.mxu0 0.0
      %582 = vmatpush1.xpose.msra.mxu0 0.0
      %583 = vmatprep.subr.mxu0 0.0
      %584 = vmatpush1.xpose.msra.mxu0 0.0
      %585 = vmatprep.subr.mxu0 0.0
      %586 = vmatpush1.xpose.msra.mxu0 0.0
      %587 = vmatprep.subr.mxu0 0.0
      %588 = vmatpush1.xpose.msra.mxu0 0.0
      %589 = vmatprep.subr.mxu0 0.0
      %590 = vmatpush1.xpose.msra.mxu0 0.0
      %591 = vmatprep.subr.mxu0 0.0
      %592 = vmatpush1.xpose.msra.mxu0 0.0
      %593 = vmatprep.subr.mxu0 0.0
      %594 = vmatpush1.xpose.msra.mxu0 0.0
      %595 = vmatprep.subr.mxu0 0.0
      %596 = vmatpush1.xpose.msra.mxu0 0.0
      %597 = vmatprep.subr.mxu0 0.0
      %598 = vmatpush1.xpose.msra.mxu0 0.0
      %599 = vmatprep.subr.mxu0 0.0
      %600 = vmatpush1.xpose.msra.mxu0 0.0
      %601 = vmatprep.subr.mxu0 0.0
      %602 = vmatpush1.xpose.msra.mxu0 0.0
      %603 = vmatprep.subr.mxu0 0.0
      %604 = vmatpush1.xpose.msra.mxu0 0.0
      %605 = vmatprep.subr.mxu0 0.0
      %606 = vmatpush1.xpose.msra.mxu0 0.0
      %607 = vmatprep.subr.mxu0 0.0
      %608 = vmatpush1.xpose.msra.mxu0 0.0
      %609 = vmatprep.mubr.f32.mxu0 0.0
      %610 = vmatmul.mubr.f32.gmra.mrb[0].mxu0 %v540
      %v611 = vpop.f32.mrb[0].mxu0
      %v612 = vadd.f32 %v510, %v611
      %v613 = vpop.f32.mrb[0].mxu0
      %614 = vdwg.mxu0
      %vm615 = vcmask 60416
      %616 = vst.msk [vmem:[%s219] sm:$0xf] %vm615, %v612
      %p617 = scmp.lt.s32.totalorder %s16, 1
      %s618 = scalar_select %p617, %s16, 1
      %s619 = smul.addr %s618, 4
      %s620 = scalar_lea.vmem %s5, %s619
      // Predicated region
      $region41: #{encoder_layer_forward.1} parent=39 // pred_check
        %p621 = pneg %p144
      $region42: #{encoder_layer_forward.1} parent=39 // pred_check_branch
        %623 = sbr.rel (%p621) target = $region44
      $region43: #{encoder_layer_forward.1} parent=39 // pred_region
        _
      $region44: #{encoder_layer_forward.1} parent=39 // pred_fallthru
        _
    $region40: #{encoder_layer_forward.1} parent=5 // pred_fallthru
      _
    %p624 = scmp.le.s32.totalorder 2, %s11
    // Predicated region
    $region45: #{encoder_layer_forward.1} parent=5 // pred_check
      %p625 = pneg %p624
    $region46: #{encoder_layer_forward.1} parent=5 // pred_check_branch
      %627 = sbr.rel (%p625) target = $region48
    $region47: #{encoder_layer_forward.1} parent=5 // pred_region
      %s628 = ssub.s32 %s11, 2
      // Predicated region
      $region49: #{encoder_layer_forward.1} parent=47 // pred_check
        %p629 = pneg %p150
      $region50: #{encoder_layer_forward.1} parent=47 // pred_check_branch
        %631 = sbr.rel (%p629) target = $region52
      $region51: #{encoder_layer_forward.1} parent=47 // pred_region
        %p632 = scmp.lt.s32.totalorder %s17, 1
        %s633 = scalar_select %p632, %s17, 1
        %s634 = smul.addr %s633, 4
        %s635 = scalar_lea.vmem %s5, %s634
      $region52: #{encoder_layer_forward.1} parent=47 // pred_fallthru
        _
    $region48: #{encoder_layer_forward.1} parent=5 // pred_fallthru
      _
  $region6: #{encoder_layer_forward.1} parent=0 // loop_footer
    %s15 = sadd.s32 1, %s11
  $region7: #{encoder_layer_forward.1} parent=0 // loop_footer_branch
    %10 = sbr.rel target = $region3
  $region8: #{encoder_layer_forward.1} parent=0 // loop_exit
    _

</llo_original>
